<compile_context>
chip_gen: v6e
topology: v6e:2x2x1
jax: 0.10.0
libtpu: 0.0.40
codegen_flags: <defaults>
</compile_context>

<pallas_src>
import functools

import jax
import jax.numpy as jnp
import numpy as np
from jax import lax
from jax.experimental import pallas as pl
from jax.experimental.pallas import tpu as pltpu


def _attention_kernel(enc_ref, att2_ref, weT_ref, wf_ref, bf_ref,
                      awe_ref, alpha_ref, *, valid_pixels=None):
    TB, P, E = enc_ref.shape
    A = weT_ref.shape[1]

    enc = enc_ref[...]                                       # (TB, P, E) bf16/f32

    # encoder_att: one big MXU matmul with M = TB*P rows, f32 accumulation.
    # P is padded in the wrapper to the sublane packing, so this reshape does
    # not materialize a relayout copy.
    att1 = jnp.dot(enc.reshape(TB * P, E), weT_ref[...],
                   preferred_element_type=jnp.float32)       # (TB*P, A)
    att1 = att1.reshape(TB, P, A)

    # att2 already contains decoder_att(decoder_hidden) + bd + be (hoisted).
    h = jnp.maximum(att1 + att2_ref[...][:, None, :], 0.0)   # (TB, P, A) f32

    # full_att: VPU multiply + lane reduce — keeps the pixel axis on lanes so
    # the softmax and the alpha store need no transpose.
    att = jnp.sum(h * wf_ref[...], axis=-1) + bf_ref[...]    # (TB, P)

    if valid_pixels is not None:                             # wrapper-padded pixels
        pix = lax.broadcasted_iota(jnp.int32, att.shape, 1)
        att = jnp.where(pix < valid_pixels, att, -1e30)

    # softmax over pixels (lane axis), numerically stable, f32 throughout.
    # NOTE: approx reciprocal (EUP slot) means rows sum to 1 only to ~1e-3/1e-4;
    # switch to approx=False if exact normalization is required downstream.
    m = jnp.max(att, axis=-1, keepdims=True)
    e = jnp.exp(att - m)
    denom = jnp.sum(e, axis=-1, keepdims=True)
    alpha = e * pl.reciprocal(denom, approx=True)            # (TB, P)
    alpha_ref[...] = alpha                                   # lane-dense store

    # attention-weighted encoding: VPU multiply (f32) + XLU sublane reduce.
    # (If a bundle dump shows the XLU as the binding slot after the bf16
    # change, this contraction can move to the MXU as a batched dot_general.)
    awe_ref[...] = jnp.sum(enc.astype(jnp.float32) * alpha[:, :, None], axis=1)


def _vmem_params():
    """Per-generation VMEM sizing: a working-set budget for the tile picker
    and an explicit scoped-VMEM limit for Mosaic.  v7x has 64 MiB per core,
    v5e/v6e have 128 MiB; the default scoped limits (16/32 MiB) are too small
    for production shapes."""
    try:
        vmem = int(pltpu.get_tpu_info().vmem_capacity_bytes)
    except Exception:
        vmem = 64 << 20                      # conservative: v7x-sized VMEM
    budget = int(0.40 * vmem)                # ~26 MiB on v7x, ~51 MiB on v5e/v6e
    limit = min(int(0.70 * vmem), budget + (32 << 20))
    return budget, limit


def _pick_batch_tile(B, P, E, A, enc_bytes, budget_bytes):
    """Largest batch tile (multiple of 8, divides B) whose *full* pipeline
    working set fits the budget, keeping >= 2 grid steps when B allows so the
    'parallel' axis can shard across v7x's two TensorCores."""
    def working_set(tb):
        return (2 * tb * P * E * enc_bytes            # encoder tile (double-buffered)
                + 2 * tb * A * 4                      # att2 tile
                + 2 * (E * A * enc_bytes + A * 4 + 4)  # weT / wf / bf (double-buffered)
                + 2 * tb * (E + P) * 4                # awe / alpha output tiles
                + 3 * tb * P * A * 4)                 # att1 / relu / mul intermediates

    assert B % 8 == 0, B
    best = 8          # base case: if even tb=8 exceeds the budget we still use
    tb = 8            # it (cannot go smaller than one sublane tile).
    while tb <= B:
        if (B % tb == 0 and working_set(tb) <= budget_bytes
                and (B // tb >= 2 or B == 8)):
            best = tb
        tb += 8
    return best


@functools.partial(jax.jit, static_argnames=("batch_tile", "matmul_in_bf16"))
def attention_forward(encoder_out, decoder_hidden, we, be, wd, bd, wf, bf,
                      *, batch_tile=None, matmul_in_bf16=True):
    """encoder_out: (B,P,E), decoder_hidden: (B,D).
    we:(A,E) be:(A,) wd:(A,D) bd:(A,) wf:(1,A) bf:(1,)  (torch nn.Linear)."""
    B, P, E = encoder_out.shape
    A = we.shape[0]

    enc_dtype = jnp.bfloat16 if matmul_in_bf16 else jnp.float32
    enc_bytes = 2 if matmul_in_bf16 else 4

    # Hoisted decoder projection: one batched XLA matmul for the whole batch,
    # with both pixel-broadcast biases folded in (f32, highest precision).
    att2 = (jnp.dot(decoder_hidden, wd.T, precision=lax.Precision.HIGHEST)
            + bd + be).astype(jnp.float32)                        # (B, A)

    # Pixel padding: keep P a multiple of the sublane packing so the in-kernel
    # (TB, P, E) -> (TB*P, E) reshape stays a view (no per-step VMEM copy).
    p_mult = 16 if matmul_in_bf16 else 8
    Pp = -(-P // p_mult) * p_mult

    # Batch padding / tile choice: blocks must be (8,*)-sublane aligned, and
    # we keep >= 2 grid steps so both v7x TensorCores get work.
    vmem_budget, vmem_limit = _vmem_params()
    if batch_tile is not None:
        tb = int(batch_tile)
        Bp = -(-B // tb) * tb          # pad instead of asserting divisibility
    else:
        Bp = B if B % 8 == 0 else -(-B // 16) * 16
        tb = _pick_batch_tile(Bp, Pp, E, A, enc_bytes, vmem_budget)
    grid = (Bp // tb,)

    enc = encoder_out.astype(enc_dtype)
    if Bp != B or Pp != P:
        enc = jnp.pad(enc, ((0, Bp - B), (0, Pp - P), (0, 0)))
    if Bp != B:
        att2 = jnp.pad(att2, ((0, Bp - B), (0, 0)))

    weT = we.T.astype(enc_dtype)                                  # (E, A)
    wf_row = wf.reshape(1, A).astype(jnp.float32)
    bf2 = bf.reshape(1, 1).astype(jnp.float32)

    kernel = functools.partial(_attention_kernel,
                               valid_pixels=(P if Pp != P else None))

    cost = pl.CostEstimate(
        flops=2 * Bp * Pp * E * A + 2 * Bp * Pp * E + 4 * Bp * Pp * A,
        transcendentals=Bp * Pp + Bp,
        bytes_accessed=(Bp * Pp * E * enc_bytes + Bp * A * 4
                        + E * A * enc_bytes + A * 4
                        + Bp * E * 4 + Bp * Pp * 4),
    )

    # Note: at tiny demo shapes (E, P < 128) the output stores are masked
    # partial stores; production shapes (E ~ 2048, P padded) are lane-dense.
    awe, alpha = pl.pallas_call(
        kernel,
        out_shape=(
            jax.ShapeDtypeStruct((Bp, E), jnp.float32),
            jax.ShapeDtypeStruct((Bp, Pp), jnp.float32),
        ),
        grid=grid,
        in_specs=[
            pl.BlockSpec((tb, Pp, E), lambda b: (b, 0, 0)),   # encoder_out tile
            pl.BlockSpec((tb, A), lambda b: (b, 0)),          # hoisted att2(+biases)
            # Grid-invariant weight blocks (counted as double-buffered in the
            # VMEM budget; single-buffering them would recover ~E*A*enc_bytes
            # on v7x).
            pl.BlockSpec((E, A), lambda b: (0, 0)),           # encoder_att weight^T
            pl.BlockSpec((1, A), lambda b: (0, 0)),           # full_att weight (row)
            pl.BlockSpec((1, 1), lambda b: (0, 0)),           # full_att bias
        ],
        out_specs=(
            pl.BlockSpec((tb, E), lambda b: (b, 0)),          # attention-weighted enc
            pl.BlockSpec((tb, Pp), lambda b: (b, 0)),         # alpha (lane-dense)
        ),
        compiler_params=pltpu.CompilerParams(
            dimension_semantics=("parallel",),
            vmem_limit_bytes=vmem_limit),
        cost_estimate=cost,
    )(enc, att2, weT, wf_row, bf2)

    if Bp != B:
        awe = awe[:B]
    if Bp != B or Pp != P:
        alpha = alpha[:B, :P]
    return awe, alpha


def _reference(encoder_out, decoder_hidden, we, be, wd, bd, wf, bf):
    att1 = encoder_out @ we.T + be                 # (B,P,A)
    att2 = decoder_hidden @ wd.T + bd              # (B,A)
    h = jnp.maximum(att1 + att2[:, None, :], 0.0)  # (B,P,A)
    att = (h @ wf.T + bf)[..., 0]                  # (B,P)
    alpha = jax.nn.softmax(att, axis=1)            # (B,P)
    awe = (encoder_out * alpha[:, :, None]).sum(axis=1)
    return awe, alpha


if __name__ == "__main__":
    key = jax.random.PRNGKey(0)
    k = jax.random.split(key, 16)

    # --- test 1: default bf16 encoder stream, batch padded 2 -> 16 ----------
    B, P, E, D, A = 2, 16, 32, 32, 32
    encoder_out = jax.random.normal(k[0], (B, P, E), dtype=jnp.float32)
    decoder_hidden = jax.random.normal(k[1], (B, D), dtype=jnp.float32)
    # torch nn.Linear shapes: weight (out, in), bias (out,).
    we = jax.random.normal(k[2], (A, E), dtype=jnp.float32) * 0.1
    be = jax.random.normal(k[3], (A,), dtype=jnp.float32) * 0.1
    wd = jax.random.normal(k[4], (A, D), dtype=jnp.float32) * 0.1
    bd = jax.random.normal(k[5], (A,), dtype=jnp.float32) * 0.1
    wf = jax.random.normal(k[6], (1, A), dtype=jnp.float32) * 0.1
    bf = jax.random.normal(k[7], (1,), dtype=jnp.float32) * 0.1

    awe, alpha = attention_forward(encoder_out, decoder_hidden,
                                   we, be, wd, bd, wf, bf)
    jax.block_until_ready((awe, alpha))
    awe_r, alpha_r = _reference(encoder_out, decoder_hidden,
                                we, be, wd, bd, wf, bf)
    np.testing.assert_allclose(np.asarray(awe), np.asarray(awe_r),
                               rtol=3e-2, atol=1e-2)
    np.testing.assert_allclose(np.asarray(alpha), np.asarray(alpha_r),
                               rtol=3e-2, atol=2e-3)

    # --- test 2: f32 path with ragged batch/pixels (padding + masking) ------
    B2, P2, E2, D2, A2 = 3, 12, 32, 16, 32
    encoder_out2 = jax.random.normal(k[8], (B2, P2, E2), dtype=jnp.float32)
    decoder_hidden2 = jax.random.normal(k[9], (B2, D2), dtype=jnp.float32)
    we2 = jax.random.normal(k[10], (A2, E2), dtype=jnp.float32) * 0.1
    be2 = jax.random.normal(k[11], (A2,), dtype=jnp.float32) * 0.1
    wd2 = jax.random.normal(k[12], (A2, D2), dtype=jnp.float32) * 0.1
    bd2 = jax.random.normal(k[13], (A2,), dtype=jnp.float32) * 0.1
    wf2 = jax.random.normal(k[14], (1, A2), dtype=jnp.float32) * 0.1
    bf2 = jax.random.normal(k[15], (1,), dtype=jnp.float32) * 0.1

    awe2, alpha2 = attention_forward(encoder_out2, decoder_hidden2,
                                     we2, be2, wd2, bd2, wf2, bf2,
                                     matmul_in_bf16=False)
    jax.block_until_ready((awe2, alpha2))
    awe2_r, alpha2_r = _reference(encoder_out2, decoder_hidden2,
                                  we2, be2, wd2, bd2, wf2, bf2)
    np.testing.assert_allclose(np.asarray(awe2), np.asarray(awe2_r),
                               rtol=2e-3, atol=2e-3)
    np.testing.assert_allclose(np.asarray(alpha2), np.asarray(alpha2_r),
                               rtol=2e-3, atol=2e-3)

    print("KERNEL_OK")
</pallas_src>

<mosaic_0001>
module attributes {stable_mosaic.version = 11 : i64} {
  func.func @_attention_kernel(%arg0: i32, %arg1: memref<8x16x32xbf16, #tpu.memory_space<vmem>>, %arg2: memref<8x32xf32, #tpu.memory_space<vmem>>, %arg3: memref<32x32xbf16, #tpu.memory_space<vmem>>, %arg4: memref<1x32xf32, #tpu.memory_space<vmem>>, %arg5: memref<1x1xf32, #tpu.memory_space<vmem>>, %arg6: memref<8x32xf32, #tpu.memory_space<vmem>>, %arg7: memref<8x16xf32, #tpu.memory_space<vmem>>) attributes {dimension_semantics = [#tpu.dimension_semantics<parallel>], iteration_bounds = array<i64: 2>, scalar_prefetch = 0 : i64, scratch_operands = 0 : i64, tpu.core_type = #tpu.core_type<tc>, window_params = [{transform_indices = @transform_0, window_bounds = array<i64: 8, 16, 32>}, {transform_indices = @transform_1, window_bounds = array<i64: 8, 32>}, {pipeline_mode = #tpu.pipeline_mode<synchronous>, transform_indices = @transform_2, window_bounds = array<i64: 32, 32>}, {pipeline_mode = #tpu.pipeline_mode<synchronous>, transform_indices = @transform_3, window_bounds = array<i64: 1, 32>}, {pipeline_mode = #tpu.pipeline_mode<synchronous>, transform_indices = @transform_4, window_bounds = array<i64: 1, 1>}, {transform_indices = @transform_5, window_bounds = array<i64: 8, 32>}, {transform_indices = @transform_6, window_bounds = array<i64: 8, 16>}]} {
    %c0 = arith.constant 0 : index
    %c0_0 = arith.constant 0 : index
    %c0_1 = arith.constant 0 : index
    %0 = vector.load %arg1[%c0, %c0_0, %c0_1] : memref<8x16x32xbf16, #tpu.memory_space<vmem>>, vector<8x16x32xbf16>
    %1 = vector.shape_cast %0 : vector<8x16x32xbf16> to vector<128x32xbf16>
    %c0_2 = arith.constant 0 : index
    %c0_3 = arith.constant 0 : index
    %2 = vector.load %arg3[%c0_2, %c0_3] : memref<32x32xbf16, #tpu.memory_space<vmem>>, vector<32x32xbf16>
    %cst = arith.constant dense<0.000000e+00> : vector<128x32xf32>
    %3 = tpu.matmul %1, %2, %cst {dimension_numbers = #tpu.dot_dimension_numbers<[1], [0], [0], [1], [0, 0, 1, 1], [], []>} : vector<128x32xbf16>, vector<32x32xbf16>, vector<128x32xf32> -> vector<128x32xf32>
    %4 = vector.shape_cast %3 : vector<128x32xf32> to vector<8x16x32xf32>
    %c0_4 = arith.constant 0 : index
    %c0_5 = arith.constant 0 : index
    %5 = vector.load %arg2[%c0_4, %c0_5] : memref<8x32xf32, #tpu.memory_space<vmem>>, vector<8x32xf32>
    %6 = vector.shape_cast %5 : vector<8x32xf32> to vector<8x1x32xf32>
    %7 = vector.broadcast %6 : vector<8x1x32xf32> to vector<8x16x32xf32>
    %8 = arith.addf %4, %7 : vector<8x16x32xf32>
    %cst_6 = arith.constant 0.000000e+00 : f32
    %9 = vector.broadcast %cst_6 : f32 to vector<8x16x32xf32>
    %10 = arith.maximumf %8, %9 : vector<8x16x32xf32>
    %c0_7 = arith.constant 0 : index
    %c0_8 = arith.constant 0 : index
    %11 = vector.load %arg4[%c0_7, %c0_8] : memref<1x32xf32, #tpu.memory_space<vmem>>, vector<1x32xf32>
    %12 = vector.shape_cast %11 : vector<1x32xf32> to vector<1x1x32xf32>
    %13 = vector.broadcast %12 : vector<1x1x32xf32> to vector<8x16x32xf32>
    %14 = arith.mulf %10, %13 : vector<8x16x32xf32>
    %cst_9 = arith.constant dense<0.000000e+00> : vector<8x16xf32>
    %15 = vector.multi_reduction <add>, %14, %cst_9 [2] : vector<8x16x32xf32> to vector<8x16xf32>
    %c0_10 = arith.constant 0 : index
    %c0_11 = arith.constant 0 : index
    %16 = vector.load %arg5[%c0_10, %c0_11] : memref<1x1xf32, #tpu.memory_space<vmem>>, vector<1x1xf32>
    %17 = vector.broadcast %16 : vector<1x1xf32> to vector<8x16xf32>
    %18 = arith.addf %15, %17 : vector<8x16xf32>
    %cst_12 = arith.constant dense<0xFF800000> : vector<8xf32>
    %19 = vector.multi_reduction <maximumf>, %18, %cst_12 [1] : vector<8x16xf32> to vector<8xf32>
    %20 = vector.shape_cast %19 : vector<8xf32> to vector<8x1xf32>
    %21 = vector.broadcast %20 : vector<8x1xf32> to vector<8x16xf32>
    %22 = arith.subf %18, %21 : vector<8x16xf32>
    %23 = math.exp %22 : vector<8x16xf32>
    %cst_13 = arith.constant dense<0.000000e+00> : vector<8xf32>
    %24 = vector.multi_reduction <add>, %23, %cst_13 [1] : vector<8x16xf32> to vector<8xf32>
    %25 = vector.shape_cast %24 : vector<8xf32> to vector<8x1xf32>
    %26 = tpu.reciprocal %25 {approx = true} : vector<8x1xf32> -> vector<8x1xf32>
    %27 = vector.broadcast %26 : vector<8x1xf32> to vector<8x16xf32>
    %28 = arith.mulf %23, %27 : vector<8x16xf32>
    %c0_14 = arith.constant 0 : index
    %c0_15 = arith.constant 0 : index
    %29 = vector.load %arg7[%c0_14, %c0_15] : memref<8x16xf32, #tpu.memory_space<vmem>>, vector<8x16xf32>
    tpu.vector_store %arg7[%c0_14, %c0_15], %28 {strides = array<i32>} : memref<8x16xf32, #tpu.memory_space<vmem>>, vector<8x16xf32>,
    %30 = arith.extf %0 : vector<8x16x32xbf16> to vector<8x16x32xf32>
    %31 = vector.shape_cast %28 : vector<8x16xf32> to vector<8x16x1xf32>
    %32 = vector.broadcast %31 : vector<8x16x1xf32> to vector<8x16x32xf32>
    %33 = arith.mulf %30, %32 : vector<8x16x32xf32>
    %cst_16 = arith.constant dense<0.000000e+00> : vector<8x32xf32>
    %34 = vector.multi_reduction <add>, %33, %cst_16 [1] : vector<8x16x32xf32> to vector<8x32xf32>
    %c0_17 = arith.constant 0 : index
    %c0_18 = arith.constant 0 : index
    %35 = vector.load %arg6[%c0_17, %c0_18] : memref<8x32xf32, #tpu.memory_space<vmem>>, vector<8x32xf32>
    tpu.vector_store %arg6[%c0_17, %c0_18], %34 {strides = array<i32>} : memref<8x32xf32, #tpu.memory_space<vmem>>, vector<8x32xf32>,
    return
  }
  func.func @transform_0(%arg0: i32) -> (i32, i32, i32) {
    %c0_i32 = arith.constant 0 : i32
    %c0_i32_0 = arith.constant 0 : i32
    %c0_i32_1 = arith.constant 0 : i32
    return %arg0, %c0_i32, %c0_i32_0 : i32, i32, i32
  }
  func.func @transform_1(%arg0: i32) -> (i32, i32) {
    %c0_i32 = arith.constant 0 : i32
    %c0_i32_0 = arith.constant 0 : i32
    return %arg0, %c0_i32 : i32, i32
  }
  func.func @transform_2(%arg0: i32) -> (i32, i32) {
    %c0_i32 = arith.constant 0 : i32
    %c0_i32_0 = arith.constant 0 : i32
    %c0_i32_1 = arith.constant 0 : i32
    return %c0_i32, %c0_i32_0 : i32, i32
  }
  func.func @transform_3(%arg0: i32) -> (i32, i32) {
    %c0_i32 = arith.constant 0 : i32
    %c0_i32_0 = arith.constant 0 : i32
    %c0_i32_1 = arith.constant 0 : i32
    return %c0_i32, %c0_i32_0 : i32, i32
  }
  func.func @transform_4(%arg0: i32) -> (i32, i32) {
    %c0_i32 = arith.constant 0 : i32
    %c0_i32_0 = arith.constant 0 : i32
    %c0_i32_1 = arith.constant 0 : i32
    return %c0_i32, %c0_i32_0 : i32, i32
  }
  func.func @transform_5(%arg0: i32) -> (i32, i32) {
    %c0_i32 = arith.constant 0 : i32
    %c0_i32_0 = arith.constant 0 : i32
    return %arg0, %c0_i32 : i32, i32
  }
  func.func @transform_6(%arg0: i32) -> (i32, i32) {
    %c0_i32 = arith.constant 0 : i32
    %c0_i32_0 = arith.constant 0 : i32
    return %arg0, %c0_i32 : i32, i32
  }
}

</mosaic_0001>

<llo_original>
// kernel: attention_forward.1
$region0: #{attention_forward.1}
  #allocation0 [shape = 'u32[]', space=smem, size = 0x4, offset = 0x4, fixed_abs, tag = 'smem constant byte address 0x4 - core index']
  #allocation1 [shape = 'u32[144,128]{1,0:T(1,128)}', space=vmem, size = 0x12000, scoped, tag = 'internal scratch']
  #allocation2 [shape = 'f32[1,1]{1,0:T(1,128)S(1)}', space=vmem, size = 0x200, scoped, tag = 'scoped memory for attention_forward.1']
  %s0 = inlined_call_operand.vmem [shape: bf16[16,16,32], index: 0, kind: input, shape index: {}]
  %s1 = inlined_call_operand.vmem [shape: f32[16,32], index: 1, kind: input, shape index: {}]
  %s2 = inlined_call_operand.vmem [shape: bf16[32,32], index: 2, kind: input, shape index: {}]
  %s3 = inlined_call_operand.vmem [shape: f32[1,32], index: 3, kind: input, shape index: {}]
  %s4 = inlined_call_operand.<no memory space> [shape: f32[1,1], index: 4, kind: input, shape index: {}]
  %s5 = inlined_call_operand.vmem [shape: f32[16,32], index: 5, kind: output, shape index: {0}]
  %s6 = inlined_call_operand.vmem [shape: f32[16,16], index: 6, kind: output, shape index: {1}]
  %7 = xla_tuple %s5, %s6
  %s8 = sld [smem:[#allocation0]]
  $region61: #{attention_forward.1} parent=0
    _
  %s10 = ssub.s32 1, %s8
  %s11 = scalar_select 0, %s10, %s8
  %v12 = vstv %s4
  %13 = vst [vmem:[#allocation2] sm:$0x1] %v12
  loop: start=0, step=1, limit=4
  $region2: #{attention_forward.1} parent=0 // loop_pre_header
    _
  $region3: #{attention_forward.1} parent=0 // loop_header
    %s15 = sphi 0, %s19
    %p16 = scmp.ge.s32.totalorder %s15, 4
    %s25 = sphi 0, %s27
    %s28 = sphi 0, %s25
    %s29 = sphi 0, %s28
    %s45 = sphi 0, %s29
    %s51 = sphi 0, %s53
    %s54 = sphi 0, %s51
    %s55 = sphi 0, %s54
    %s71 = sphi 0, %s55
    %s75 = sphi 0, %s75
    %s77 = sphi 0, %s75
    %s78 = sphi 0, %s77
    %s92 = sphi 0, %s78
    %s96 = sphi 0, %s96
    %s98 = sphi 0, %s96
    %s99 = sphi 0, %s98
    %s113 = sphi 0, %s99
    %s117 = sphi 0, %s117
    %s119 = sphi 0, %s117
    %s120 = sphi 0, %s119
    %s134 = sphi 0, %s120
    %s140 = sphi 0, %s142
    %s143 = sphi 0, %s140
    %s144 = sphi 0, %s143
    %s160 = sphi 0, %s144
    %s166 = sphi 0, %s168
    %s169 = sphi 0, %s166
    %s170 = sphi 0, %s169
    %s186 = sphi 0, %s170
  $region4: #{attention_forward.1} parent=0 // loop_header_branch
    %18 = sbr.rel (%p16) target = $region8
  $region5: #{attention_forward.1} parent=0 // loop_body
    %s20 = ssub.s32 %s15, 1
    %s21 = ssub.s32 %s15, 2
    %s22 = sadd.s32 %s15, 1
    %s23 = ssub.s32 %s15, %s22
    %p24 = scmp.eq.s32.totalorder %s23, 0
    %s26 = sadd.s32 %s25, 1
    %s27 = scalar_select %p24, %s25, %s26
    %p30 = pneg %p24
    %p31 = scmp.eq.s32.totalorder %s15, 1
    %p32 = por %p30, %p31
    %p33 = scmp.ne.s32.totalorder %s25, %s28
    %p34 = scmp.eq.s32.totalorder %s15, 0
    %p35 = por %p33, %p34
    %p36 = scmp.ne.s32.totalorder %s25, %s28
    %p37 = scmp.eq.s32.totalorder %s20, 1
    %p38 = por %p36, %p37
    %p39 = scmp.ne.s32.totalorder %s28, %s29
    %p40 = scmp.eq.s32.totalorder %s20, 0
    %p41 = por %p39, %p40
    %p42 = scmp.ne.s32.totalorder %s28, %s29
    %p43 = scmp.eq.s32.totalorder %s21, 1
    %p44 = por %p42, %p43
    %p46 = scmp.ne.s32.totalorder %s29, %s45
    %p47 = scmp.eq.s32.totalorder %s21, 0
    %p48 = por %p46, %p47
    %s49 = ssub.s32 %s15, %s22
    %p50 = scmp.eq.s32.totalorder %s49, 0
    %s52 = sadd.s32 %s51, 1
    %s53 = scalar_select %p50, %s51, %s52
    %p56 = pneg %p50
    %p57 = scmp.eq.s32.totalorder %s15, 1
    %p58 = por %p56, %p57
    %p59 = scmp.ne.s32.totalorder %s51, %s54
    %p60 = scmp.eq.s32.totalorder %s15, 0
    %p61 = por %p59, %p60
    %p62 = scmp.ne.s32.totalorder %s51, %s54
    %p63 = scmp.eq.s32.totalorder %s20, 1
    %p64 = por %p62, %p63
    %p65 = scmp.ne.s32.totalorder %s54, %s55
    %p66 = scmp.eq.s32.totalorder %s20, 0
    %p67 = por %p65, %p66
    %p68 = scmp.ne.s32.totalorder %s54, %s55
    %p69 = scmp.eq.s32.totalorder %s21, 1
    %p70 = por %p68, %p69
    %p72 = scmp.ne.s32.totalorder %s55, %s71
    %p73 = scmp.eq.s32.totalorder %s21, 0
    %p74 = por %p72, %p73
    %s76 = sadd.s32 %s75, 1
    %p79 = scmp.eq.s32.totalorder %s15, 1
    %p80 = scmp.ne.s32.totalorder %s75, %s77
    %p81 = scmp.eq.s32.totalorder %s15, 0
    %p82 = por %p80, %p81
    %p83 = scmp.ne.s32.totalorder %s75, %s77
    %p84 = scmp.eq.s32.totalorder %s20, 1
    %p85 = por %p83, %p84
    %p86 = scmp.ne.s32.totalorder %s77, %s78
    %p87 = scmp.eq.s32.totalorder %s20, 0
    %p88 = por %p86, %p87
    %p89 = scmp.ne.s32.totalorder %s77, %s78
    %p90 = scmp.eq.s32.totalorder %s21, 1
    %p91 = por %p89, %p90
    %p93 = scmp.ne.s32.totalorder %s78, %s92
    %p94 = scmp.eq.s32.totalorder %s21, 0
    %p95 = por %p93, %p94
    %s97 = sadd.s32 %s96, 1
    %p100 = scmp.eq.s32.totalorder %s15, 1
    %p101 = scmp.ne.s32.totalorder %s96, %s98
    %p102 = scmp.eq.s32.totalorder %s15, 0
    %p103 = por %p101, %p102
    %p104 = scmp.ne.s32.totalorder %s96, %s98
    %p105 = scmp.eq.s32.totalorder %s20, 1
    %p106 = por %p104, %p105
    %p107 = scmp.ne.s32.totalorder %s98, %s99
    %p108 = scmp.eq.s32.totalorder %s20, 0
    %p109 = por %p107, %p108
    %p110 = scmp.ne.s32.totalorder %s98, %s99
    %p111 = scmp.eq.s32.totalorder %s21, 1
    %p112 = por %p110, %p111
    %p114 = scmp.ne.s32.totalorder %s99, %s113
    %p115 = scmp.eq.s32.totalorder %s21, 0
    %p116 = por %p114, %p115
    %s118 = sadd.s32 %s117, 1
    %p121 = scmp.eq.s32.totalorder %s15, 1
    %p122 = scmp.ne.s32.totalorder %s117, %s119
    %p123 = scmp.eq.s32.totalorder %s15, 0
    %p124 = por %p122, %p123
    %p125 = scmp.ne.s32.totalorder %s117, %s119
    %p126 = scmp.eq.s32.totalorder %s20, 1
    %p127 = por %p125, %p126
    %p128 = scmp.ne.s32.totalorder %s119, %s120
    %p129 = scmp.eq.s32.totalorder %s20, 0
    %p130 = por %p128, %p129
    %p131 = scmp.ne.s32.totalorder %s119, %s120
    %p132 = scmp.eq.s32.totalorder %s21, 1
    %p133 = por %p131, %p132
    %p135 = scmp.ne.s32.totalorder %s120, %s134
    %p136 = scmp.eq.s32.totalorder %s21, 0
    %p137 = por %p135, %p136
    %s138 = ssub.s32 %s15, %s22
    %p139 = scmp.eq.s32.totalorder %s138, 0
    %s141 = sadd.s32 %s140, 1
    %s142 = scalar_select %p139, %s140, %s141
    %p145 = pneg %p139
    %p146 = scmp.eq.s32.totalorder %s15, 1
    %p147 = por %p145, %p146
    %p148 = scmp.ne.s32.totalorder %s140, %s143
    %p149 = scmp.eq.s32.totalorder %s15, 0
    %p150 = por %p148, %p149
    %p151 = scmp.ne.s32.totalorder %s140, %s143
    %p152 = scmp.eq.s32.totalorder %s20, 1
    %p153 = por %p151, %p152
    %p154 = scmp.ne.s32.totalorder %s143, %s144
    %p155 = scmp.eq.s32.totalorder %s20, 0
    %p156 = por %p154, %p155
    %p157 = scmp.ne.s32.totalorder %s143, %s144
    %p158 = scmp.eq.s32.totalorder %s21, 1
    %p159 = por %p157, %p158
    %p161 = scmp.ne.s32.totalorder %s144, %s160
    %p162 = scmp.eq.s32.totalorder %s21, 0
    %p163 = por %p161, %p162
    %s164 = ssub.s32 %s15, %s22
    %p165 = scmp.eq.s32.totalorder %s164, 0
    %s167 = sadd.s32 %s166, 1
    %s168 = scalar_select %p165, %s166, %s167
    %p171 = pneg %p165
    %p172 = scmp.eq.s32.totalorder %s15, 1
    %p173 = por %p171, %p172
    %p174 = scmp.ne.s32.totalorder %s166, %s169
    %p175 = scmp.eq.s32.totalorder %s15, 0
    %p176 = por %p174, %p175
    %p177 = scmp.ne.s32.totalorder %s166, %s169
    %p178 = scmp.eq.s32.totalorder %s20, 1
    %p179 = por %p177, %p178
    %p180 = scmp.ne.s32.totalorder %s169, %s170
    %p181 = scmp.eq.s32.totalorder %s20, 0
    %p182 = por %p180, %p181
    %p183 = scmp.ne.s32.totalorder %s169, %s170
    %p184 = scmp.eq.s32.totalorder %s21, 1
    %p185 = por %p183, %p184
    %p187 = scmp.ne.s32.totalorder %s170, %s186
    %p188 = scmp.eq.s32.totalorder %s21, 0
    %p189 = por %p187, %p188
    %p190 = scmp.le.s32.totalorder 1, %s15
    %p191 = scmp.lt.s32.totalorder %s15, 3
    %p192 = pnand %p190, %p191
    %p193 = pneg %p192
    // Predicated region
    $region9: #{attention_forward.1} parent=5 // pred_check
      _
    $region10: #{attention_forward.1} parent=5 // pred_check_branch
      %195 = sbr.rel (%p192) target = $region12
    $region11: #{attention_forward.1} parent=5 // pred_region
      %s196 = ssub.s32 %s15, 1
      // Predicated region
      $region13: #{attention_forward.1} parent=11 // pred_check
        %p197 = pneg %p88
      $region14: #{attention_forward.1} parent=11 // pred_check_branch
        %199 = sbr.rel (%p197) target = $region16
      $region15: #{attention_forward.1} parent=11 // pred_region
        _
      $region16: #{attention_forward.1} parent=11 // pred_fallthru
        _
      // Predicated region
      $region17: #{attention_forward.1} parent=11 // pred_check
        %p200 = pneg %p109
      $region18: #{attention_forward.1} parent=11 // pred_check_branch
        %202 = sbr.rel (%p200) target = $region20
      $region19: #{attention_forward.1} parent=11 // pred_region
        _
      $region20: #{attention_forward.1} parent=11 // pred_fallthru
        _
      // Predicated region
      $region21: #{attention_forward.1} parent=11 // pred_check
        %p203 = pneg %p130
      $region22: #{attention_forward.1} parent=11 // pred_check_branch
        %205 = sbr.rel (%p203) target = $region24
      $region23: #{attention_forward.1} parent=11 // pred_region
        _
      $region24: #{attention_forward.1} parent=11 // pred_fallthru
        _
    $region12: #{attention_forward.1} parent=5 // pred_fallthru
      _
    %p206 = scmp.lt.s32.totalorder %s15, 2
    // Predicated region
    $region25: #{attention_forward.1} parent=5 // pred_check
      %p207 = pneg %p206
    $region26: #{attention_forward.1} parent=5 // pred_check_branch
      %209 = sbr.rel (%p207) target = $region28
    $region27: #{attention_forward.1} parent=5 // pred_region
      // Predicated region
      $region29: #{attention_forward.1} parent=27 // pred_check
        %p210 = pneg %p35
      $region30: #{attention_forward.1} parent=27 // pred_check_branch
        %212 = sbr.rel (%p210) target = $region32
      $region31: #{attention_forward.1} parent=27 // pred_region
        %s213 = smul.u32 8, %s15
        %p214 = scmp.lt.s32.totalorder %s213, 15
        %s215 = scalar_select %p214, %s213, 15
        %s216 = smul.addr %s215, 2
        %s217 = smul.addr %s216, 4
        %s218 = scalar_lea.vmem %s0, %s217
        %s219 = smul.u32 8, %s15
      $region32: #{attention_forward.1} parent=27 // pred_fallthru
        _
      // Predicated region
      $region33: #{attention_forward.1} parent=27 // pred_check
        %p220 = pneg %p61
      $region34: #{attention_forward.1} parent=27 // pred_check_branch
        %222 = sbr.rel (%p220) target = $region36
      $region35: #{attention_forward.1} parent=27 // pred_region
        %p223 = scmp.lt.s32.totalorder %s15, 1
        %s224 = scalar_select %p223, %s15, 1
        %s225 = smul.addr %s224, 8
        %s226 = scalar_lea.vmem %s1, %s225
      $region36: #{attention_forward.1} parent=27 // pred_fallthru
        _
    $region28: #{attention_forward.1} parent=5 // pred_fallthru
      _
    %p227 = scmp.le.s32.totalorder 1, %s15
    %p228 = scmp.lt.s32.totalorder %s15, 3
    %p229 = pnand %p227, %p228
    %p230 = pneg %p229
    // Predicated region
    $region37: #{attention_forward.1} parent=5 // pred_check
      _
    $region38: #{attention_forward.1} parent=5 // pred_check_branch
      %232 = sbr.rel (%p229) target = $region40
    $region39: #{attention_forward.1} parent=5 // pred_region
      %s233 = ssub.s32 %s15, 1
      %s234 = smul.u32 8, %s20
      %p235 = scmp.lt.s32.totalorder %s234, 15
      %s236 = scalar_select %p235, %s234, 15
      %s237 = smul.addr %s236, 2
      %s238 = smul.addr %s237, 4
      %s239 = scalar_lea.vmem %s0, %s238
      %p240 = pneg %p41
      %p241 = pneg %p38
      %p242 = scmp.lt.s32.totalorder %s20, 1
      %s243 = scalar_select %p242, %s20, 1
      %s244 = smul.addr %s243, 8
      %s245 = scalar_lea.vmem %s1, %s244
      %p246 = pneg %p67
      %p247 = pneg %p64
      %p248 = pneg %p88
      %p249 = pneg %p85
      %p250 = pneg %p109
      %p251 = pneg %p106
      %p252 = pneg %p130
      %p253 = pneg %p127
      %p254 = pneg %p156
      %p255 = pneg %p153
      %p256 = scmp.lt.s32.totalorder %s20, 1
      %s257 = scalar_select %p256, %s20, 1
      %s258 = smul.addr %s257, 8
      %s259 = scalar_lea.vmem %s5, %s258
      %p260 = pneg %p182
      %p261 = pneg %p179
      %p262 = scmp.lt.s32.totalorder %s20, 1
      %s263 = scalar_select %p262, %s20, 1
      %s264 = smul.addr %s263, 8
      %s265 = scalar_lea.vmem %s6, %s264
      %s266 = smul.u32 8, %s20
      %p267 = scmp.lt.s32.totalorder %s266, 15
      %s268 = scalar_select %p267, %s266, 15
      %s269 = smul.addr %s268, 2
      %s270 = smul.addr %s269, 4
      %s271 = scalar_lea.vmem %s0, %s270
      %s272 = smul.u32 8, %s20
      %p273 = scmp.lt.s32.totalorder %s20, 1
      %s274 = scalar_select %p273, %s20, 1
      %s275 = smul.addr %s274, 8
      %s276 = scalar_lea.vmem %s1, %s275
      %p277 = scmp.lt.s32.totalorder %s20, 1
      %s278 = scalar_select %p277, %s20, 1
      %s279 = smul.addr %s278, 8
      %s280 = scalar_lea.vmem %s5, %s279
      %p281 = scmp.lt.s32.totalorder %s20, 1
      %s282 = scalar_select %p281, %s20, 1
      %s283 = smul.addr %s282, 8
      %s284 = scalar_lea.vmem %s6, %s283
      %v286 = vld [vmem:[%s271] sm:$0xf]
      %v287 = vld [vmem:[%s271 + $0x4] sm:$0xf]
      %v288 = vld [vmem:[%s271 + $0x8] sm:$0xf]
      %v289 = vld [vmem:[%s271 + $0xc] sm:$0xf]
      %v290 = vld [vmem:[%s271 + $0x10] sm:$0xf]
      %v291 = vld [vmem:[%s271 + $0x14] sm:$0xf]
      %v292 = vld [vmem:[%s271 + $0x18] sm:$0xf]
      %v293 = vld [vmem:[%s271 + $0x1c] sm:$0xf]
      %v294 = vld [vmem:[%s271 + $0x20] sm:$0xf]
      %v295 = vld [vmem:[%s271 + $0x24] sm:$0xf]
      %v296 = vld [vmem:[%s271 + $0x28] sm:$0xf]
      %v297 = vld [vmem:[%s271 + $0x2c] sm:$0xf]
      %v298 = vld [vmem:[%s271 + $0x30] sm:$0xf]
      %v299 = vld [vmem:[%s271 + $0x34] sm:$0xf]
      %v300 = vld [vmem:[%s271 + $0x38] sm:$0xf]
      %v301 = vld [vmem:[%s271 + $0x3c] sm:$0xf]
      %v302 = vld [vmem:[%s2] sm:$0xf]
      %v303 = vld [vmem:[%s2 + $0x4] sm:$0xf]
      %v304 = vld [vmem:[%s2 + $0x8] sm:$0xf]
      %v305 = vld [vmem:[%s2 + $0xc] sm:$0xf]
      %v322 = vunpack.c.l.b16 %v286
      %v323 = vunpack.c.l.b16 %v287
      %v324 = vunpack.c.l.b16 %v288
      %v325 = vunpack.c.l.b16 %v289
      %v326 = vunpack.c.l.b16 %v290
      %v327 = vunpack.c.l.b16 %v291
      %v328 = vunpack.c.l.b16 %v292
      %v329 = vunpack.c.l.b16 %v293
      %v330 = vunpack.c.l.b16 %v294
      %v331 = vunpack.c.l.b16 %v295
      %v332 = vunpack.c.l.b16 %v296
      %v333 = vunpack.c.l.b16 %v297
      %v334 = vunpack.c.l.b16 %v298
      %v335 = vunpack.c.l.b16 %v299
      %v336 = vunpack.c.l.b16 %v300
      %v337 = vunpack.c.l.b16 %v301
      %v338 = vpack.c.b16 %v323, %v322
      %v339 = vpack.c.b16 %v325, %v324
      %v340 = vpack.c.b16 %v327, %v326
      %v341 = vpack.c.b16 %v329, %v328
      %v342 = vpack.c.b16 %v331, %v330
      %v343 = vpack.c.b16 %v333, %v332
      %v344 = vpack.c.b16 %v335, %v334
      %v345 = vpack.c.b16 %v337, %v336
      %v350 = vunpack.c.l.b16 %v302
      %v351 = vunpack.c.l.b16 %v303
      %v352 = vunpack.c.l.b16 %v304
      %v353 = vunpack.c.l.b16 %v305
      %v354 = vpack.c.b16 %v351, %v350
      %v355 = vpack.c.b16 %v353, %v352
      %vm358 = vcmask 261120
      %v360 = vsel %vm358, %v338, 0
      %v363 = vsel %vm358, %v339, 0
      %v366 = vsel %vm358, %v340, 0
      %v369 = vsel %vm358, %v341, 0
      %v372 = vsel %vm358, %v342, 0
      %v375 = vsel %vm358, %v343, 0
      %v378 = vsel %vm358, %v344, 0
      %v381 = vsel %vm358, %v345, 0
      %383 = vmatprep.subr.bf16.mxu0 0
      %384 = vmatpush1.bf16.msra.mxu0 0
      %385 = vmatprep.subr.bf16.mxu0 0
      %386 = vmatpush1.bf16.msra.mxu0 0
      %387 = vmatprep.subr.bf16.mxu0 0
      %388 = vmatpush1.bf16.msra.mxu0 0
      %389 = vmatprep.subr.bf16.mxu0 0
      %390 = vmatpush1.bf16.msra.mxu0 0
      %391 = vmatprep.subr.bf16.mxu0 0
      %392 = vmatpush1.bf16.msra.mxu0 0
      %393 = vmatprep.subr.bf16.mxu0 0
      %394 = vmatpush1.bf16.msra.mxu0 0
      %395 = vmatprep.subr.bf16.mxu0 0
      %396 = vmatpush1.bf16.msra.mxu0 %v355
      %397 = vmatprep.subr.bf16.mxu0 0
      %398 = vmatpush1.bf16.msra.mxu0 %v354
      %399 = vmatprep.subr.bf16.mxu0 0
      %400 = vmatpush2.bf16.msra.mxu0 0
      %401 = vmatprep.subr.bf16.mxu0 0
      %402 = vmatpush2.bf16.msra.mxu0 0
      %403 = vmatprep.subr.bf16.mxu0 0
      %404 = vmatpush2.bf16.msra.mxu0 0
      %405 = vmatprep.subr.bf16.mxu0 0
      %406 = vmatpush2.bf16.msra.mxu0 0
      %407 = vmatprep.subr.bf16.mxu0 0
      %408 = vmatpush2.bf16.msra.mxu0 0
      %409 = vmatprep.subr.bf16.mxu0 0
      %410 = vmatpush2.bf16.msra.mxu0 0
      %411 = vmatprep.subr.bf16.mxu0 0
      %412 = vmatpush2.bf16.msra.mxu0 0
      %413 = vmatprep.subr.bf16.mxu0 0
      %414 = vmatpush2.bf16.msra.mxu0 0
      %415 = vmatprep.mubr.bf16.mxu0 0
      %416 = vmatmul.mubr.bf16.gmra.mxu0 %v360
      %v417 = vpop.f32.mrf.mxu0
      %v418 = vadd.f32 0.0, %v417
      %v419 = vpop.f32.mrf.mxu0
      %v420 = vpop.f32.mrf.mxu0
      %v421 = vadd.f32 0.0, %v420
      %v422 = vpop.f32.mrf.mxu0
      %423 = vmatprep.mubr.bf16.mxu0 0
      %424 = vmatmul.mubr.bf16.gmra.mxu0 %v363
      %v425 = vpop.f32.mrf.mxu0
      %v426 = vadd.f32 0.0, %v425
      %v427 = vpop.f32.mrf.mxu0
      %v428 = vpop.f32.mrf.mxu0
      %v429 = vadd.f32 0.0, %v428
      %v430 = vpop.f32.mrf.mxu0
      %431 = vmatprep.mubr.bf16.mxu0 0
      %432 = vmatmul.mubr.bf16.gmra.mxu0 %v366
      %v433 = vpop.f32.mrf.mxu0
      %v434 = vadd.f32 0.0, %v433
      %v435 = vpop.f32.mrf.mxu0
      %v436 = vpop.f32.mrf.mxu0
      %v437 = vadd.f32 0.0, %v436
      %v438 = vpop.f32.mrf.mxu0
      %439 = vmatprep.mubr.bf16.mxu0 0
      %440 = vmatmul.mubr.bf16.gmra.mxu0 %v369
      %v441 = vpop.f32.mrf.mxu0
      %v442 = vadd.f32 0.0, %v441
      %v443 = vpop.f32.mrf.mxu0
      %v444 = vpop.f32.mrf.mxu0
      %v445 = vadd.f32 0.0, %v444
      %v446 = vpop.f32.mrf.mxu0
      %447 = vmatprep.mubr.bf16.mxu0 0
      %448 = vmatmul.mubr.bf16.gmra.mxu0 %v372
      %v449 = vpop.f32.mrf.mxu0
      %v450 = vadd.f32 0.0, %v449
      %v451 = vpop.f32.mrf.mxu0
      %v452 = vpop.f32.mrf.mxu0
      %v453 = vadd.f32 0.0, %v452
      %v454 = vpop.f32.mrf.mxu0
      %455 = vmatprep.mubr.bf16.mxu0 0
      %456 = vmatmul.mubr.bf16.gmra.mxu0 %v375
      %v457 = vpop.f32.mrf.mxu0
      %v458 = vadd.f32 0.0, %v457
      %v459 = vpop.f32.mrf.mxu0
      %v460 = vpop.f32.mrf.mxu0
      %v461 = vadd.f32 0.0, %v460
      %v462 = vpop.f32.mrf.mxu0
      %463 = vmatprep.mubr.bf16.mxu0 0
      %464 = vmatmul.mubr.bf16.gmra.mxu0 %v378
      %v465 = vpop.f32.mrf.mxu0
      %v466 = vadd.f32 0.0, %v465
      %v467 = vpop.f32.mrf.mxu0
      %v468 = vpop.f32.mrf.mxu0
      %v469 = vadd.f32 0.0, %v468
      %v470 = vpop.f32.mrf.mxu0
      %471 = vmatprep.mubr.bf16.mxu0 0
      %472 = vmatmul.mubr.bf16.gmra.mxu0 %v381
      %v473 = vpop.f32.mrf.mxu0
      %v474 = vadd.f32 0.0, %v473
      %v475 = vpop.f32.mrf.mxu0
      %v476 = vpop.f32.mrf.mxu0
      %v477 = vadd.f32 0.0, %v476
      %v478 = vpop.f32.mrf.mxu0
      %479 = vdwg.mxu0
      %v480 = vld [vmem:[%s276] sm:$0xff]
      %v482 = vcombine.high %v480, %v480
      %v484 = vunpack.c.l.s4 1966171168
      %v485 = vunpack.c.0.s8 %v484
      %v486 = vlaneseq
      %v487 = vshrl.u32 %v486, 7
      %v488 = vsub.s32 %v485, %v487
      %v489 = vrot.slane %v480, %v488
      %v491 = vunpack.c.l.s4 1966171168
      %v492 = vunpack.c.0.s8 %v491
      %v493 = vlaneseq
      %v494 = vshrl.u32 %v493, 7
      %v495 = vsub.s32 %v492, %v494
      %v496 = vrot.slane %v482, %v495
      %v497 = vcombine.high %v489, %v489
      %v498 = vcombine.high %v496, %v496
      %v500 = vunpack.c.l.s4 1966171168
      %v501 = vunpack.c.0.s8 %v500
      %v502 = vlaneseq
      %v503 = vshrl.u32 %v502, 7
      %v504 = vsub.s32 %v501, %v503
      %v505 = vrot.slane %v489, %v504
      %v507 = vunpack.c.l.s4 1966171168
      %v508 = vunpack.c.0.s8 %v507
      %v509 = vlaneseq
      %v510 = vshrl.u32 %v509, 7
      %v511 = vsub.s32 %v508, %v510
      %v512 = vrot.slane %v496, %v511
      %v514 = vunpack.c.l.s4 1966171168
      %v515 = vunpack.c.0.s8 %v514
      %v516 = vlaneseq
      %v517 = vshrl.u32 %v516, 7
      %v518 = vsub.s32 %v515, %v517
      %v519 = vrot.slane %v497, %v518
      %v521 = vunpack.c.l.s4 1966171168
      %v522 = vunpack.c.0.s8 %v521
      %v523 = vlaneseq
      %v524 = vshrl.u32 %v523, 7
      %v525 = vsub.s32 %v522, %v524
      %v526 = vrot.slane %v498, %v525
      %v527 = vcombine.high %v505, %v505
      %v528 = vcombine.high %v512, %v512
      %v529 = vcombine.high %v519, %v519
      %v530 = vcombine.high %v526, %v526
      %v531 = vlaneseq
      %v532 = vshrl.u32 %v531, 7
      %v533 = vsub.s32 0, %v532
      %v534 = vrot.slane %v505, %v533
      %v535 = vlaneseq
      %v536 = vshrl.u32 %v535, 7
      %v537 = vsub.s32 0, %v536
      %v538 = vrot.slane %v519, %v537
      %v539 = vlaneseq
      %v540 = vshrl.u32 %v539, 7
      %v541 = vsub.s32 0, %v540
      %v542 = vrot.slane %v527, %v541
      %v543 = vlaneseq
      %v544 = vshrl.u32 %v543, 7
      %v545 = vsub.s32 0, %v544
      %v546 = vrot.slane %v529, %v545
      %v547 = vlaneseq
      %v548 = vshrl.u32 %v547, 7
      %v549 = vsub.s32 0, %v548
      %v550 = vrot.slane %v512, %v549
      %v551 = vlaneseq
      %v552 = vshrl.u32 %v551, 7
      %v553 = vsub.s32 0, %v552
      %v554 = vrot.slane %v526, %v553
      %v555 = vlaneseq
      %v556 = vshrl.u32 %v555, 7
      %v557 = vsub.s32 0, %v556
      %v558 = vrot.slane %v528, %v557
      %v559 = vlaneseq
      %v560 = vshrl.u32 %v559, 7
      %v561 = vsub.s32 0, %v560
      %v562 = vrot.slane %v530, %v561
      %v571 = vadd.f32 %v418, %v534
      %v572 = vadd.f32 %v421, %v534
      %v573 = vadd.f32 %v426, %v538
      %v574 = vadd.f32 %v429, %v538
      %v575 = vadd.f32 %v434, %v542
      %v576 = vadd.f32 %v437, %v542
      %v577 = vadd.f32 %v442, %v546
      %v578 = vadd.f32 %v445, %v546
      %v579 = vadd.f32 %v450, %v550
      %v580 = vadd.f32 %v453, %v550
      %v581 = vadd.f32 %v458, %v554
      %v582 = vadd.f32 %v461, %v554
      %v583 = vadd.f32 %v466, %v558
      %v584 = vadd.f32 %v469, %v558
      %v585 = vadd.f32 %v474, %v562
      %v586 = vadd.f32 %v477, %v562
      %v587 = vmax.f32 %v571, 0.0
      %v588 = vmax.f32 %v572, 0.0
      %v589 = vmax.f32 %v573, 0.0
      %v590 = vmax.f32 %v574, 0.0
      %v591 = vmax.f32 %v575, 0.0
      %v592 = vmax.f32 %v576, 0.0
      %v593 = vmax.f32 %v577, 0.0
      %v594 = vmax.f32 %v578, 0.0
      %v595 = vmax.f32 %v579, 0.0
      %v596 = vmax.f32 %v580, 0.0
      %v597 = vmax.f32 %v581, 0.0
      %v598 = vmax.f32 %v582, 0.0
      %v599 = vmax.f32 %v583, 0.0
      %v600 = vmax.f32 %v584, 0.0
      %v601 = vmax.f32 %v585, 0.0
      %v602 = vmax.f32 %v586, 0.0
      %v603 = vld [vmem:[%s3] sm:$0x1]
      %v605 = vlaneseq
      %v606 = vshrl.u32 %v605, 7
      %v607 = vsub.s32 0, %v606
      %v608 = vrot.slane %v603, %v607
      %v610 = vmul.f32 %v587, %v608
      %v611 = vmul.f32 %v588, %v608
      %v612 = vmul.f32 %v589, %v608
      %v613 = vmul.f32 %v590, %v608
      %v614 = vmul.f32 %v591, %v608
      %v615 = vmul.f32 %v592, %v608
      %v616 = vmul.f32 %v593, %v608
      %v617 = vmul.f32 %v594, %v608
      %v618 = vmul.f32 %v595, %v608
      %v619 = vmul.f32 %v596, %v608
      %v620 = vmul.f32 %v597, %v608
      %v621 = vmul.f32 %v598, %v608
      %v622 = vmul.f32 %v599, %v608
      %v623 = vmul.f32 %v600, %v608
      %v624 = vmul.f32 %v601, %v608
      %v625 = vmul.f32 %v602, %v608
      %v626 = vsel %vm358, %v610, 0.0
      %627 = vadd.xlane.f32.xlu0 %v626
      %v628 = vpop.xlane.xlu0 %627
      %v629 = vsel %vm358, %v611, 0.0
      %630 = vadd.xlane.f32.xlu0 %v629
      %v631 = vpop.xlane.xlu0 %630
      %v632 = vsel %vm358, %v612, 0.0
      %633 = vadd.xlane.f32.xlu0 %v632
      %v634 = vpop.xlane.xlu0 %633
      %v635 = vsel %vm358, %v613, 0.0
      %636 = vadd.xlane.f32.xlu0 %v635
      %v637 = vpop.xlane.xlu0 %636
      %v638 = vsel %vm358, %v614, 0.0
      %639 = vadd.xlane.f32.xlu0 %v638
      %v640 = vpop.xlane.xlu0 %639
      %v641 = vsel %vm358, %v615, 0.0
      %642 = vadd.xlane.f32.xlu0 %v641
      %v643 = vpop.xlane.xlu0 %642
      %v644 = vsel %vm358, %v616, 0.0
      %645 = vadd.xlane.f32.xlu0 %v644
      %v646 = vpop.xlane.xlu0 %645
      %v647 = vsel %vm358, %v617, 0.0
      %648 = vadd.xlane.f32.xlu0 %v647
      %v649 = vpop.xlane.xlu0 %648
      %v650 = vsel %vm358, %v618, 0.0
      %651 = vadd.xlane.f32.xlu0 %v650
      %v652 = vpop.xlane.xlu0 %651
      %v653 = vsel %vm358, %v619, 0.0
      %654 = vadd.xlane.f32.xlu0 %v653
      %v655 = vpop.xlane.xlu0 %654
      %v656 = vsel %vm358, %v620, 0.0
      %657 = vadd.xlane.f32.xlu0 %v656
      %v658 = vpop.xlane.xlu0 %657
      %v659 = vsel %vm358, %v621, 0.0
      %660 = vadd.xlane.f32.xlu0 %v659
      %v661 = vpop.xlane.xlu0 %660
      %v662 = vsel %vm358, %v622, 0.0
      %663 = vadd.xlane.f32.xlu0 %v662
      %v664 = vpop.xlane.xlu0 %663
      %v665 = vsel %vm358, %v623, 0.0
      %666 = vadd.xlane.f32.xlu0 %v665
      %v667 = vpop.xlane.xlu0 %666
      %v668 = vsel %vm358, %v624, 0.0
      %669 = vadd.xlane.f32.xlu0 %v668
      %v670 = vpop.xlane.xlu0 %669
      %v671 = vsel %vm358, %v625, 0.0
      %672 = vadd.xlane.f32.xlu0 %v671
      %v673 = vpop.xlane.xlu0 %672
      %v674 = vld [vmem:[#allocation2] sm:$0x1]
      %v676 = vlaneseq
      %v677 = vshrl.u32 %v676, 7
      %v678 = vsub.s32 0, %v677
      %v679 = vrot.slane %v674, %v678
      %680 = vset.pattern.permute.xlu0 0
      %681 = vperm.xlu0 %680, %v679
      %v682 = vpop.permute.xlu0 %681
      %v684 = vadd.f32 %v628, %v682
      %v685 = vadd.f32 %v631, %v682
      %v686 = vadd.f32 %v634, %v682
      %v687 = vadd.f32 %v637, %v682
      %v688 = vadd.f32 %v640, %v682
      %v689 = vadd.f32 %v643, %v682
      %v690 = vadd.f32 %v646, %v682
      %v691 = vadd.f32 %v649, %v682
      %v692 = vadd.f32 %v652, %v682
      %v693 = vadd.f32 %v655, %v682
      %v694 = vadd.f32 %v658, %v682
      %v695 = vadd.f32 %v661, %v682
      %v696 = vadd.f32 %v664, %v682
      %v697 = vadd.f32 %v667, %v682
      %v698 = vadd.f32 %v670, %v682
      %v699 = vadd.f32 %v673, %v682
      %v716 = vlaneseq
      %v717 = vand.u32 %v716, 127
      %v718 = vlaneseq
      %v719 = vshrl.u32 %v718, 7
      %v720 = vsub.s32 %v717, %v719
      %v721 = vrot.slane %v684, %v720
      %v722 = vadd.s32 %v717, 4294967288
      %v723 = vlaneseq
      %v724 = vshrl.u32 %v723, 7
      %v725 = vsub.s32 %v722, %v724
      %v726 = vrot.slane %v685, %v725
      %vm727 = vcmask 130112
      %v728 = vsel %vm727, %v726, %v721
      %v729 = vlaneseq
      %v730 = vshrl.u32 %v729, 7
      %v731 = vsub.s32 %v717, %v730
      %v732 = vrot.slane %v686, %v731
      %v733 = vlaneseq
      %v734 = vshrl.u32 %v733, 7
      %v735 = vsub.s32 %v722, %v734
      %v736 = vrot.slane %v687, %v735
      %v737 = vsel %vm727, %v736, %v732
      %v738 = vlaneseq
      %v739 = vshrl.u32 %v738, 7
      %v740 = vsub.s32 %v717, %v739
      %v741 = vrot.slane %v688, %v740
      %v742 = vlaneseq
      %v743 = vshrl.u32 %v742, 7
      %v744 = vsub.s32 %v722, %v743
      %v745 = vrot.slane %v689, %v744
      %v746 = vsel %vm727, %v745, %v741
      %v747 = vlaneseq
      %v748 = vshrl.u32 %v747, 7
      %v749 = vsub.s32 %v717, %v748
      %v750 = vrot.slane %v690, %v749
      %v751 = vlaneseq
      %v752 = vshrl.u32 %v751, 7
      %v753 = vsub.s32 %v722, %v752
      %v754 = vrot.slane %v691, %v753
      %v755 = vsel %vm727, %v754, %v750
      %v756 = vlaneseq
      %v757 = vshrl.u32 %v756, 7
      %v758 = vsub.s32 %v717, %v757
      %v759 = vrot.slane %v692, %v758
      %v760 = vlaneseq
      %v761 = vshrl.u32 %v760, 7
      %v762 = vsub.s32 %v722, %v761
      %v763 = vrot.slane %v693, %v762
      %v764 = vsel %vm727, %v763, %v759
      %v765 = vlaneseq
      %v766 = vshrl.u32 %v765, 7
      %v767 = vsub.s32 %v717, %v766
      %v768 = vrot.slane %v694, %v767
      %v769 = vlaneseq
      %v770 = vshrl.u32 %v769, 7
      %v771 = vsub.s32 %v722, %v770
      %v772 = vrot.slane %v695, %v771
      %v773 = vsel %vm727, %v772, %v768
      %v774 = vlaneseq
      %v775 = vshrl.u32 %v774, 7
      %v776 = vsub.s32 %v717, %v775
      %v777 = vrot.slane %v696, %v776
      %v778 = vlaneseq
      %v779 = vshrl.u32 %v778, 7
      %v780 = vsub.s32 %v722, %v779
      %v781 = vrot.slane %v697, %v780
      %v782 = vsel %vm727, %v781, %v777
      %v783 = vlaneseq
      %v784 = vshrl.u32 %v783, 7
      %v785 = vsub.s32 %v717, %v784
      %v786 = vrot.slane %v698, %v785
      %v787 = vlaneseq
      %v788 = vshrl.u32 %v787, 7
      %v789 = vsub.s32 %v722, %v788
      %v790 = vrot.slane %v699, %v789
      %v791 = vsel %vm727, %v790, %v786
      %vm792 = vcmask 1041409
      %v793 = vsel %vm792, %v737, %v728
      %vm794 = vcmask 1042434
      %v795 = vsel %vm794, %v746, %v793
      %vm796 = vcmask 1043459
      %v797 = vsel %vm796, %v755, %v795
      %vm798 = vcmask 1044484
      %v799 = vsel %vm798, %v764, %v797
      %vm800 = vcmask 1045509
      %v801 = vsel %vm800, %v773, %v799
      %vm802 = vcmask 1046534
      %v803 = vsel %vm802, %v782, %v801
      %vm804 = vcmask 1047559
      %v805 = vsel %vm804, %v791, %v803
      %vm807 = vcmask 130048
      %v808 = vsel %vm807, %v805, -inf
      %809 = vmax.xlane.f32.xlu0 %v808
      %v810 = vpop.xlane.xlu0 %809
      %v812 = vlaneseq
      %v813 = vshrl.u32 %v812, 7
      %v814 = vsub.s32 0, %v813
      %v815 = vrot.slane %v810, %v814
      %v816 = vlaneseq
      %v817 = vshrl.u32 %v816, 7
      %v818 = vsub.s32 1, %v817
      %v819 = vrot.slane %v810, %v818
      %v820 = vlaneseq
      %v821 = vshrl.u32 %v820, 7
      %v822 = vsub.s32 2, %v821
      %v823 = vrot.slane %v810, %v822
      %v824 = vlaneseq
      %v825 = vshrl.u32 %v824, 7
      %v826 = vsub.s32 3, %v825
      %v827 = vrot.slane %v810, %v826
      %v828 = vlaneseq
      %v829 = vshrl.u32 %v828, 7
      %v830 = vsub.s32 4, %v829
      %v831 = vrot.slane %v810, %v830
      %v832 = vlaneseq
      %v833 = vshrl.u32 %v832, 7
      %v834 = vsub.s32 5, %v833
      %v835 = vrot.slane %v810, %v834
      %v836 = vlaneseq
      %v837 = vshrl.u32 %v836, 7
      %v838 = vsub.s32 6, %v837
      %v839 = vrot.slane %v810, %v838
      %v840 = vlaneseq
      %v841 = vshrl.u32 %v840, 7
      %v842 = vsub.s32 7, %v841
      %v843 = vrot.slane %v810, %v842
      %v852 = vsub.f32 %v684, %v815
      %v853 = vsub.f32 %v685, %v815
      %v854 = vsub.f32 %v686, %v819
      %v855 = vsub.f32 %v687, %v819
      %v856 = vsub.f32 %v688, %v823
      %v857 = vsub.f32 %v689, %v823
      %v858 = vsub.f32 %v690, %v827
      %v859 = vsub.f32 %v691, %v827
      %v860 = vsub.f32 %v692, %v831
      %v861 = vsub.f32 %v693, %v831
      %v862 = vsub.f32 %v694, %v835
      %v863 = vsub.f32 %v695, %v835
      %v864 = vsub.f32 %v696, %v839
      %v865 = vsub.f32 %v697, %v839
      %v866 = vsub.f32 %v698, %v843
      %v867 = vsub.f32 %v699, %v843
      %v868 = vmul.f32 %v852, 1.442695
      %v869 = vpow.pop %v868
      %v870 = vmul.f32 %v853, 1.442695
      %v871 = vpow.pop %v870
      %v872 = vmul.f32 %v854, 1.442695
      %v873 = vpow.pop %v872
      %v874 = vmul.f32 %v855, 1.442695
      %v875 = vpow.pop %v874
      %v876 = vmul.f32 %v856, 1.442695
      %v877 = vpow.pop %v876
      %v878 = vmul.f32 %v857, 1.442695
      %v879 = vpow.pop %v878
      %v880 = vmul.f32 %v858, 1.442695
      %v881 = vpow.pop %v880
      %v882 = vmul.f32 %v859, 1.442695
      %v883 = vpow.pop %v882
      %v884 = vmul.f32 %v860, 1.442695
      %v885 = vpow.pop %v884
      %v886 = vmul.f32 %v861, 1.442695
      %v887 = vpow.pop %v886
      %v888 = vmul.f32 %v862, 1.442695
      %v889 = vpow.pop %v888
      %v890 = vmul.f32 %v863, 1.442695
      %v891 = vpow.pop %v890
      %v892 = vmul.f32 %v864, 1.442695
      %v893 = vpow.pop %v892
      %v894 = vmul.f32 %v865, 1.442695
      %v895 = vpow.pop %v894
      %v896 = vmul.f32 %v866, 1.442695
      %v897 = vpow.pop %v896
      %v898 = vmul.f32 %v867, 1.442695
      %v899 = vpow.pop %v898
      %916 = vset.pattern.permute.xlu0 0
      %917 = vperm.xlu0 %916, %v869
      %v918 = vpop.permute.xlu0 %917
      %919 = vset.pattern.permute.xlu0 0
      %920 = vperm.xlu0 %919, %v871
      %v921 = vpop.permute.xlu0 %920
      %922 = vset.pattern.permute.xlu0 0
      %923 = vperm.xlu0 %922, %v873
      %v924 = vpop.permute.xlu0 %923
      %925 = vset.pattern.permute.xlu0 0
      %926 = vperm.xlu0 %925, %v875
      %v927 = vpop.permute.xlu0 %926
      %928 = vset.pattern.permute.xlu0 0
      %929 = vperm.xlu0 %928, %v877
      %v930 = vpop.permute.xlu0 %929
      %931 = vset.pattern.permute.xlu0 0
      %932 = vperm.xlu0 %931, %v879
      %v933 = vpop.permute.xlu0 %932
      %934 = vset.pattern.permute.xlu0 0
      %935 = vperm.xlu0 %934, %v881
      %v936 = vpop.permute.xlu0 %935
      %937 = vset.pattern.permute.xlu0 0
      %938 = vperm.xlu0 %937, %v883
      %v939 = vpop.permute.xlu0 %938
      %940 = vset.pattern.permute.xlu0 0
      %941 = vperm.xlu0 %940, %v885
      %v942 = vpop.permute.xlu0 %941
      %943 = vset.pattern.permute.xlu0 0
      %944 = vperm.xlu0 %943, %v887
      %v945 = vpop.permute.xlu0 %944
      %946 = vset.pattern.permute.xlu0 0
      %947 = vperm.xlu0 %946, %v889
      %v948 = vpop.permute.xlu0 %947
      %949 = vset.pattern.permute.xlu0 0
      %950 = vperm.xlu0 %949, %v891
      %v951 = vpop.permute.xlu0 %950
      %952 = vset.pattern.permute.xlu0 0
      %953 = vperm.xlu0 %952, %v893
      %v954 = vpop.permute.xlu0 %953
      %955 = vset.pattern.permute.xlu0 0
      %956 = vperm.xlu0 %955, %v895
      %v957 = vpop.permute.xlu0 %956
      %958 = vset.pattern.permute.xlu0 0
      %959 = vperm.xlu0 %958, %v897
      %v960 = vpop.permute.xlu0 %959
      %961 = vset.pattern.permute.xlu0 0
      %962 = vperm.xlu0 %961, %v899
      %v963 = vpop.permute.xlu0 %962
      %v964 = vlaneseq
      %v965 = vshrl.u32 %v964, 7
      %v966 = vsub.s32 %v717, %v965
      %v967 = vrot.slane %v918, %v966
      %v968 = vlaneseq
      %v969 = vshrl.u32 %v968, 7
      %v970 = vsub.s32 %v722, %v969
      %v971 = vrot.slane %v921, %v970
      %v972 = vsel %vm727, %v971, %v967
      %v973 = vlaneseq
      %v974 = vshrl.u32 %v973, 7
      %v975 = vsub.s32 %v717, %v974
      %v976 = vrot.slane %v924, %v975
      %v977 = vlaneseq
      %v978 = vshrl.u32 %v977, 7
      %v979 = vsub.s32 %v722, %v978
      %v980 = vrot.slane %v927, %v979
      %v981 = vsel %vm727, %v980, %v976
      %v982 = vlaneseq
      %v983 = vshrl.u32 %v982, 7
      %v984 = vsub.s32 %v717, %v983
      %v985 = vrot.slane %v930, %v984
      %v986 = vlaneseq
      %v987 = vshrl.u32 %v986, 7
      %v988 = vsub.s32 %v722, %v987
      %v989 = vrot.slane %v933, %v988
      %v990 = vsel %vm727, %v989, %v985
      %v991 = vlaneseq
      %v992 = vshrl.u32 %v991, 7
      %v993 = vsub.s32 %v717, %v992
      %v994 = vrot.slane %v936, %v993
      %v995 = vlaneseq
      %v996 = vshrl.u32 %v995, 7
      %v997 = vsub.s32 %v722, %v996
      %v998 = vrot.slane %v939, %v997
      %v999 = vsel %vm727, %v998, %v994
      %v1000 = vlaneseq
      %v1001 = vshrl.u32 %v1000, 7
      %v1002 = vsub.s32 %v717, %v1001
      %v1003 = vrot.slane %v942, %v1002
      %v1004 = vlaneseq
      %v1005 = vshrl.u32 %v1004, 7
      %v1006 = vsub.s32 %v722, %v1005
      %v1007 = vrot.slane %v945, %v1006
      %v1008 = vsel %vm727, %v1007, %v1003
      %v1009 = vlaneseq
      %v1010 = vshrl.u32 %v1009, 7
      %v1011 = vsub.s32 %v717, %v1010
      %v1012 = vrot.slane %v948, %v1011
      %v1013 = vlaneseq
      %v1014 = vshrl.u32 %v1013, 7
      %v1015 = vsub.s32 %v722, %v1014
      %v1016 = vrot.slane %v951, %v1015
      %v1017 = vsel %vm727, %v1016, %v1012
      %v1018 = vlaneseq
      %v1019 = vshrl.u32 %v1018, 7
      %v1020 = vsub.s32 %v717, %v1019
      %v1021 = vrot.slane %v954, %v1020
      %v1022 = vlaneseq
      %v1023 = vshrl.u32 %v1022, 7
      %v1024 = vsub.s32 %v722, %v1023
      %v1025 = vrot.slane %v957, %v1024
      %v1026 = vsel %vm727, %v1025, %v1021
      %v1027 = vlaneseq
      %v1028 = vshrl.u32 %v1027, 7
      %v1029 = vsub.s32 %v717, %v1028
      %v1030 = vrot.slane %v960, %v1029
      %v1031 = vlaneseq
      %v1032 = vshrl.u32 %v1031, 7
      %v1033 = vsub.s32 %v722, %v1032
      %v1034 = vrot.slane %v963, %v1033
      %v1035 = vsel %vm727, %v1034, %v1030
      %v1036 = vsel %vm792, %v981, %v972
      %v1037 = vsel %vm794, %v990, %v1036
      %v1038 = vsel %vm796, %v999, %v1037
      %v1039 = vsel %vm798, %v1008, %v1038
      %v1040 = vsel %vm800, %v1017, %v1039
      %v1041 = vsel %vm802, %v1026, %v1040
      %v1042 = vsel %vm804, %v1035, %v1041
      %v1044 = vsel %vm807, %v1042, 0.0
      %1045 = vadd.xlane.f32.xlu0 %v1044
      %v1046 = vpop.xlane.xlu0 %1045
      %v1047 = vrcp.pop %v1046
      %v1049 = vlaneseq
      %v1050 = vshrl.u32 %v1049, 7
      %v1051 = vsub.s32 0, %v1050
      %v1052 = vrot.slane %v1047, %v1051
      %v1053 = vlaneseq
      %v1054 = vshrl.u32 %v1053, 7
      %v1055 = vsub.s32 1, %v1054
      %v1056 = vrot.slane %v1047, %v1055
      %v1057 = vlaneseq
      %v1058 = vshrl.u32 %v1057, 7
      %v1059 = vsub.s32 2, %v1058
      %v1060 = vrot.slane %v1047, %v1059
      %v1061 = vlaneseq
      %v1062 = vshrl.u32 %v1061, 7
      %v1063 = vsub.s32 3, %v1062
      %v1064 = vrot.slane %v1047, %v1063
      %v1065 = vlaneseq
      %v1066 = vshrl.u32 %v1065, 7
      %v1067 = vsub.s32 4, %v1066
      %v1068 = vrot.slane %v1047, %v1067
      %v1069 = vlaneseq
      %v1070 = vshrl.u32 %v1069, 7
      %v1071 = vsub.s32 5, %v1070
      %v1072 = vrot.slane %v1047, %v1071
      %v1073 = vlaneseq
      %v1074 = vshrl.u32 %v1073, 7
      %v1075 = vsub.s32 6, %v1074
      %v1076 = vrot.slane %v1047, %v1075
      %v1077 = vlaneseq
      %v1078 = vshrl.u32 %v1077, 7
      %v1079 = vsub.s32 7, %v1078
      %v1080 = vrot.slane %v1047, %v1079
      %v1089 = vmul.f32 %v869, %v1052
      %v1090 = vmul.f32 %v871, %v1052
      %v1091 = vmul.f32 %v873, %v1056
      %v1092 = vmul.f32 %v875, %v1056
      %v1093 = vmul.f32 %v877, %v1060
      %v1094 = vmul.f32 %v879, %v1060
      %v1095 = vmul.f32 %v881, %v1064
      %v1096 = vmul.f32 %v883, %v1064
      %v1097 = vmul.f32 %v885, %v1068
      %v1098 = vmul.f32 %v887, %v1068
      %v1099 = vmul.f32 %v889, %v1072
      %v1100 = vmul.f32 %v891, %v1072
      %v1101 = vmul.f32 %v893, %v1076
      %v1102 = vmul.f32 %v895, %v1076
      %v1103 = vmul.f32 %v897, %v1080
      %v1104 = vmul.f32 %v899, %v1080
      %1121 = vset.pattern.permute.xlu0 0
      %1122 = vperm.xlu0 %1121, %v1089
      %v1123 = vpop.permute.xlu0 %1122
      %1124 = vset.pattern.permute.xlu0 0
      %1125 = vperm.xlu0 %1124, %v1090
      %v1126 = vpop.permute.xlu0 %1125
      %1127 = vset.pattern.permute.xlu0 0
      %1128 = vperm.xlu0 %1127, %v1091
      %v1129 = vpop.permute.xlu0 %1128
      %1130 = vset.pattern.permute.xlu0 0
      %1131 = vperm.xlu0 %1130, %v1092
      %v1132 = vpop.permute.xlu0 %1131
      %1133 = vset.pattern.permute.xlu0 0
      %1134 = vperm.xlu0 %1133, %v1093
      %v1135 = vpop.permute.xlu0 %1134
      %1136 = vset.pattern.permute.xlu0 0
      %1137 = vperm.xlu0 %1136, %v1094
      %v1138 = vpop.permute.xlu0 %1137
      %1139 = vset.pattern.permute.xlu0 0
      %1140 = vperm.xlu0 %1139, %v1095
      %v1141 = vpop.permute.xlu0 %1140
      %1142 = vset.pattern.permute.xlu0 0
      %1143 = vperm.xlu0 %1142, %v1096
      %v1144 = vpop.permute.xlu0 %1143
      %1145 = vset.pattern.permute.xlu0 0
      %1146 = vperm.xlu0 %1145, %v1097
      %v1147 = vpop.permute.xlu0 %1146
      %1148 = vset.pattern.permute.xlu0 0
      %1149 = vperm.xlu0 %1148, %v1098
      %v1150 = vpop.permute.xlu0 %1149
      %1151 = vset.pattern.permute.xlu0 0
      %1152 = vperm.xlu0 %1151, %v1099
      %v1153 = vpop.permute.xlu0 %1152
      %1154 = vset.pattern.permute.xlu0 0
      %1155 = vperm.xlu0 %1154, %v1100
      %v1156 = vpop.permute.xlu0 %1155
      %1157 = vset.pattern.permute.xlu0 0
      %1158 = vperm.xlu0 %1157, %v1101
      %v1159 = vpop.permute.xlu0 %1158
      %1160 = vset.pattern.permute.xlu0 0
      %1161 = vperm.xlu0 %1160, %v1102
      %v1162 = vpop.permute.xlu0 %1161
      %1163 = vset.pattern.permute.xlu0 0
      %1164 = vperm.xlu0 %1163, %v1103
      %v1165 = vpop.permute.xlu0 %1164
      %1166 = vset.pattern.permute.xlu0 0
      %1167 = vperm.xlu0 %1166, %v1104
      %v1168 = vpop.permute.xlu0 %1167
      %v1169 = vlaneseq
      %v1170 = vshrl.u32 %v1169, 7
      %v1171 = vsub.s32 %v717, %v1170
      %v1172 = vrot.slane %v1123, %v1171
      %v1173 = vlaneseq
      %v1174 = vshrl.u32 %v1173, 7
      %v1175 = vsub.s32 %v722, %v1174
      %v1176 = vrot.slane %v1126, %v1175
      %v1177 = vsel %vm727, %v1176, %v1172
      %v1178 = vlaneseq
      %v1179 = vshrl.u32 %v1178, 7
      %v1180 = vsub.s32 %v717, %v1179
      %v1181 = vrot.slane %v1129, %v1180
      %v1182 = vlaneseq
      %v1183 = vshrl.u32 %v1182, 7
      %v1184 = vsub.s32 %v722, %v1183
      %v1185 = vrot.slane %v1132, %v1184
      %v1186 = vsel %vm727, %v1185, %v1181
      %v1187 = vlaneseq
      %v1188 = vshrl.u32 %v1187, 7
      %v1189 = vsub.s32 %v717, %v1188
      %v1190 = vrot.slane %v1135, %v1189
      %v1191 = vlaneseq
      %v1192 = vshrl.u32 %v1191, 7
      %v1193 = vsub.s32 %v722, %v1192
      %v1194 = vrot.slane %v1138, %v1193
      %v1195 = vsel %vm727, %v1194, %v1190
      %v1196 = vlaneseq
      %v1197 = vshrl.u32 %v1196, 7
      %v1198 = vsub.s32 %v717, %v1197
      %v1199 = vrot.slane %v1141, %v1198
      %v1200 = vlaneseq
      %v1201 = vshrl.u32 %v1200, 7
      %v1202 = vsub.s32 %v722, %v1201
      %v1203 = vrot.slane %v1144, %v1202
      %v1204 = vsel %vm727, %v1203, %v1199
      %v1205 = vlaneseq
      %v1206 = vshrl.u32 %v1205, 7
      %v1207 = vsub.s32 %v717, %v1206
      %v1208 = vrot.slane %v1147, %v1207
      %v1209 = vlaneseq
      %v1210 = vshrl.u32 %v1209, 7
      %v1211 = vsub.s32 %v722, %v1210
      %v1212 = vrot.slane %v1150, %v1211
      %v1213 = vsel %vm727, %v1212, %v1208
      %v1214 = vlaneseq
      %v1215 = vshrl.u32 %v1214, 7
      %v1216 = vsub.s32 %v717, %v1215
      %v1217 = vrot.slane %v1153, %v1216
      %v1218 = vlaneseq
      %v1219 = vshrl.u32 %v1218, 7
      %v1220 = vsub.s32 %v722, %v1219
      %v1221 = vrot.slane %v1156, %v1220
      %v1222 = vsel %vm727, %v1221, %v1217
      %v1223 = vlaneseq
      %v1224 = vshrl.u32 %v1223, 7
      %v1225 = vsub.s32 %v717, %v1224
      %v1226 = vrot.slane %v1159, %v1225
      %v1227 = vlaneseq
      %v1228 = vshrl.u32 %v1227, 7
      %v1229 = vsub.s32 %v722, %v1228
      %v1230 = vrot.slane %v1162, %v1229
      %v1231 = vsel %vm727, %v1230, %v1226
      %v1232 = vlaneseq
      %v1233 = vshrl.u32 %v1232, 7
      %v1234 = vsub.s32 %v717, %v1233
      %v1235 = vrot.slane %v1165, %v1234
      %v1236 = vlaneseq
      %v1237 = vshrl.u32 %v1236, 7
      %v1238 = vsub.s32 %v722, %v1237
      %v1239 = vrot.slane %v1168, %v1238
      %v1240 = vsel %vm727, %v1239, %v1235
      %v1241 = vsel %vm792, %v1186, %v1177
      %v1242 = vsel %vm794, %v1195, %v1241
      %v1243 = vsel %vm796, %v1204, %v1242
      %v1244 = vsel %vm798, %v1213, %v1243
      %v1245 = vsel %vm800, %v1222, %v1244
      %v1246 = vsel %vm802, %v1231, %v1245
      %v1247 = vsel %vm804, %v1240, %v1246
      %1249 = vst.msk [vmem:[%s284] sm:$0xff] %vm807, %v1247
      %v1250 = vunpack.c.l.bf16 %v286
      %v1251 = vunpack.c.l.bf16 %v287
      %v1252 = vunpack.c.l.bf16 %v288
      %v1253 = vunpack.c.l.bf16 %v289
      %v1254 = vunpack.c.l.bf16 %v290
      %v1255 = vunpack.c.l.bf16 %v291
      %v1256 = vunpack.c.l.bf16 %v292
      %v1257 = vunpack.c.l.bf16 %v293
      %v1258 = vunpack.c.l.bf16 %v294
      %v1259 = vunpack.c.l.bf16 %v295
      %v1260 = vunpack.c.l.bf16 %v296
      %v1261 = vunpack.c.l.bf16 %v297
      %v1262 = vunpack.c.l.bf16 %v298
      %v1263 = vunpack.c.l.bf16 %v299
      %v1264 = vunpack.c.l.bf16 %v300
      %v1265 = vunpack.c.l.bf16 %v301
      %v1282 = vmul.f32 %v1250, %v1123
      %v1283 = vmul.f32 %v1251, %v1126
      %v1284 = vmul.f32 %v1252, %v1129
      %v1285 = vmul.f32 %v1253, %v1132
      %v1286 = vmul.f32 %v1254, %v1135
      %v1287 = vmul.f32 %v1255, %v1138
      %v1288 = vmul.f32 %v1256, %v1141
      %v1289 = vmul.f32 %v1257, %v1144
      %v1290 = vmul.f32 %v1258, %v1147
      %v1291 = vmul.f32 %v1259, %v1150
      %v1292 = vmul.f32 %v1260, %v1153
      %v1293 = vmul.f32 %v1261, %v1156
      %v1294 = vmul.f32 %v1262, %v1159
      %v1295 = vmul.f32 %v1263, %v1162
      %v1296 = vmul.f32 %v1264, %v1165
      %v1297 = vmul.f32 %v1265, %v1168
      %v1298 = vsel %vm358, %v1282, 0.0
      %v1299 = vsel %vm358, %v1283, 0.0
      %v1300 = vadd.f32 %v1298, %v1299
      %v1301 = vrot.slane %v1300, 4
      %v1302 = vadd.f32 %v1300, %v1301
      %v1303 = vrot.slane %v1302, 2
      %v1304 = vadd.f32 %v1302, %v1303
      %v1305 = vrot.slane %v1304, 1
      %v1306 = vadd.f32 %v1304, %v1305
      %v1307 = vsel %vm358, %v1284, 0.0
      %v1308 = vsel %vm358, %v1285, 0.0
      %v1309 = vadd.f32 %v1307, %v1308
      %v1310 = vrot.slane %v1309, 4
      %v1311 = vadd.f32 %v1309, %v1310
      %v1312 = vrot.slane %v1311, 2
      %v1313 = vadd.f32 %v1311, %v1312
      %v1314 = vrot.slane %v1313, 1
      %v1315 = vadd.f32 %v1313, %v1314
      %v1316 = vsel %vm358, %v1286, 0.0
      %v1317 = vsel %vm358, %v1287, 0.0
      %v1318 = vadd.f32 %v1316, %v1317
      %v1319 = vrot.slane %v1318, 4
      %v1320 = vadd.f32 %v1318, %v1319
      %v1321 = vrot.slane %v1320, 2
      %v1322 = vadd.f32 %v1320, %v1321
      %v1323 = vrot.slane %v1322, 1
      %v1324 = vadd.f32 %v1322, %v1323
      %v1325 = vsel %vm358, %v1288, 0.0
      %v1326 = vsel %vm358, %v1289, 0.0
      %v1327 = vadd.f32 %v1325, %v1326
      %v1328 = vrot.slane %v1327, 4
      %v1329 = vadd.f32 %v1327, %v1328
      %v1330 = vrot.slane %v1329, 2
      %v1331 = vadd.f32 %v1329, %v1330
      %v1332 = vrot.slane %v1331, 1
      %v1333 = vadd.f32 %v1331, %v1332
      %v1334 = vsel %vm358, %v1290, 0.0
      %v1335 = vsel %vm358, %v1291, 0.0
      %v1336 = vadd.f32 %v1334, %v1335
      %v1337 = vrot.slane %v1336, 4
      %v1338 = vadd.f32 %v1336, %v1337
      %v1339 = vrot.slane %v1338, 2
      %v1340 = vadd.f32 %v1338, %v1339
      %v1341 = vrot.slane %v1340, 1
      %v1342 = vadd.f32 %v1340, %v1341
      %v1343 = vsel %vm358, %v1292, 0.0
      %v1344 = vsel %vm358, %v1293, 0.0
      %v1345 = vadd.f32 %v1343, %v1344
      %v1346 = vrot.slane %v1345, 4
      %v1347 = vadd.f32 %v1345, %v1346
      %v1348 = vrot.slane %v1347, 2
      %v1349 = vadd.f32 %v1347, %v1348
      %v1350 = vrot.slane %v1349, 1
      %v1351 = vadd.f32 %v1349, %v1350
      %v1352 = vsel %vm358, %v1294, 0.0
      %v1353 = vsel %vm358, %v1295, 0.0
      %v1354 = vadd.f32 %v1352, %v1353
      %v1355 = vrot.slane %v1354, 4
      %v1356 = vadd.f32 %v1354, %v1355
      %v1357 = vrot.slane %v1356, 2
      %v1358 = vadd.f32 %v1356, %v1357
      %v1359 = vrot.slane %v1358, 1
      %v1360 = vadd.f32 %v1358, %v1359
      %v1361 = vsel %vm358, %v1296, 0.0
      %v1362 = vsel %vm358, %v1297, 0.0
      %v1363 = vadd.f32 %v1361, %v1362
      %v1364 = vrot.slane %v1363, 4
      %v1365 = vadd.f32 %v1363, %v1364
      %v1366 = vrot.slane %v1365, 2
      %v1367 = vadd.f32 %v1365, %v1366
      %v1368 = vrot.slane %v1367, 1
      %v1369 = vadd.f32 %v1367, %v1368
      %v1378 = vsel %vm792, %v1315, %v1306
      %v1379 = vsel %vm794, %v1324, %v1378
      %v1380 = vsel %vm796, %v1333, %v1379
      %v1381 = vsel %vm798, %v1342, %v1380
      %v1382 = vsel %vm800, %v1351, %v1381
      %v1383 = vsel %vm802, %v1360, %v1382
      %v1384 = vsel %vm804, %v1369, %v1383
      %1386 = vst.msk [vmem:[%s280] sm:$0xff] %vm358, %v1384
      %p1387 = scmp.lt.s32.totalorder %s20, 1
      %s1388 = scalar_select %p1387, %s20, 1
      %s1389 = smul.addr %s1388, 8
      %s1390 = scalar_lea.vmem %s5, %s1389
      %p1391 = scmp.lt.s32.totalorder %s20, 1
      %s1392 = scalar_select %p1391, %s20, 1
      %s1393 = smul.addr %s1392, 8
      %s1394 = scalar_lea.vmem %s6, %s1393
      // Predicated region
      $region41: #{attention_forward.1} parent=39 // pred_check
        %p1395 = pneg %p153
      $region42: #{attention_forward.1} parent=39 // pred_check_branch
        %1397 = sbr.rel (%p1395) target = $region44
      $region43: #{attention_forward.1} parent=39 // pred_region
        _
      $region44: #{attention_forward.1} parent=39 // pred_fallthru
        _
      // Predicated region
      $region45: #{attention_forward.1} parent=39 // pred_check
        %p1398 = pneg %p179
      $region46: #{attention_forward.1} parent=39 // pred_check_branch
        %1400 = sbr.rel (%p1398) target = $region48
      $region47: #{attention_forward.1} parent=39 // pred_region
        _
      $region48: #{attention_forward.1} parent=39 // pred_fallthru
        _
    $region40: #{attention_forward.1} parent=5 // pred_fallthru
      _
    %p1401 = scmp.le.s32.totalorder 2, %s15
    // Predicated region
    $region49: #{attention_forward.1} parent=5 // pred_check
      %p1402 = pneg %p1401
    $region50: #{attention_forward.1} parent=5 // pred_check_branch
      %1404 = sbr.rel (%p1402) target = $region52
    $region51: #{attention_forward.1} parent=5 // pred_region
      %s1405 = ssub.s32 %s15, 2
      // Predicated region
      $region53: #{attention_forward.1} parent=51 // pred_check
        %p1406 = pneg %p159
      $region54: #{attention_forward.1} parent=51 // pred_check_branch
        %1408 = sbr.rel (%p1406) target = $region56
      $region55: #{attention_forward.1} parent=51 // pred_region
        %p1409 = scmp.lt.s32.totalorder %s21, 1
        %s1410 = scalar_select %p1409, %s21, 1
        %s1411 = smul.addr %s1410, 8
        %s1412 = scalar_lea.vmem %s5, %s1411
      $region56: #{attention_forward.1} parent=51 // pred_fallthru
        _
      // Predicated region
      $region57: #{attention_forward.1} parent=51 // pred_check
        %p1413 = pneg %p185
      $region58: #{attention_forward.1} parent=51 // pred_check_branch
        %1415 = sbr.rel (%p1413) target = $region60
      $region59: #{attention_forward.1} parent=51 // pred_region
        %p1416 = scmp.lt.s32.totalorder %s21, 1
        %s1417 = scalar_select %p1416, %s21, 1
        %s1418 = smul.addr %s1417, 8
        %s1419 = scalar_lea.vmem %s6, %s1418
      $region60: #{attention_forward.1} parent=51 // pred_fallthru
        _
    $region52: #{attention_forward.1} parent=5 // pred_fallthru
      _
  $region6: #{attention_forward.1} parent=0 // loop_footer
    %s19 = sadd.s32 1, %s15
  $region7: #{attention_forward.1} parent=0 // loop_footer_branch
    %14 = sbr.rel target = $region3
  $region8: #{attention_forward.1} parent=0 // loop_exit
    _

</llo_original>
